<compile_context>
chip_gen: v7x
topology: tpu7x:2x2x1
jax: 0.10.0
libtpu: 0.0.40
codegen_flags: <defaults>
</compile_context>

<pallas_src>
import functools
import math

import jax
import jax.numpy as jnp
from jax.experimental import pallas as pl
from jax.experimental.pallas import tpu as pltpu


# Conservative budget for the pipelined blocks (2x-buffered input + 2x output).
# Sized against v7x's 64 MiB physical VMEM; v5e/v6e (128 MiB) easily fit.
_BLOCK_BUDGET_BYTES = 24 * 1024 * 1024
_VMEM_LIMIT_BYTES = 48 * 1024 * 1024


def _largest_tile(total, unit, cap):
    """Largest multiple of `unit` that divides `total` and is <= `cap`.

    Falls back to `total` (full extent, always a legal block dim) when `total`
    is not a multiple of `unit`, and to `unit` if even the minimum tile
    exceeds `cap`.
    """
    if total % unit != 0:
        return total
    best = unit
    t = unit
    while t <= total:
        if total % t == 0 and t <= cap:
            best = t
        t += unit
    return best


def _to3d_kernel(x_ref, o_ref, *, c_in, apply_decay, apply_ec, center, strength):
    """Writes one (N, C_out, TD, THW) output block.

    grid = (num_hw_blocks, num_depth_blocks); depth is innermost so the
    (N, C_in, THW) input block stays resident across depth chunks.
    """
    n, c_out, td, thw = o_ref.shape
    x = x_ref[...]                                          # (N, C_in, THW)
    xb = jnp.broadcast_to(x[:, :, None, :], (n, c_in, td, thw))

    if apply_decay:
        # Depth indices covered by this block: j0 + [0, td).
        j0 = (pl.program_id(1) * td).astype(jnp.float32)
        iota = jax.lax.broadcasted_iota(jnp.int32, (1, 1, td, 1), 2)
        idx = j0 + iota.astype(jnp.float32)
        scale = jnp.exp(-jnp.abs(jnp.float32(center) - idx) * jnp.float32(strength))
        xb = (xb.astype(jnp.float32) * scale).astype(o_ref.dtype)
    else:
        xb = xb.astype(o_ref.dtype)

    if apply_ec:
        # Both stores are lane-dense: last block dim is THW (mult. of 128 / full HW).
        o_ref[:, :c_in, :, :] = xb
        o_ref[:, c_in:, :, :] = jnp.zeros((n, c_out - c_in, td, thw), o_ref.dtype)
    else:
        o_ref[...] = xb


def _to3d_single(x, apply_decay, apply_ec, depth=None, *, max_td=None, max_thw=None):
    n, c, h, w = x.shape
    hw = h * w
    d = int(depth) if depth is not None else min(h, w)
    c_out = c + 1 if apply_ec else c  # torch appends exactly one zero channel

    center = d // 2
    # Guard: torch's 1.0/center divides by zero for d == 1; in that limit the
    # single slice has |center - j| == 0, so its decay factor is 1.0 anyway.
    strength = (5.0 / float(center)) if (apply_decay and center > 0) else 0.0

    itemsize = jnp.dtype(x.dtype).itemsize

    # --- block sizing: lane-dense H*W tile, chunked depth ---------------------
    in_cap = _BLOCK_BUDGET_BYTES // 4                 # 2x-buffered input block
    thw_cap = max(128, in_cap // max(1, 2 * n * c * itemsize))
    if max_thw is not None:
        thw_cap = min(thw_cap, max_thw)
    thw = _largest_tile(hw, 128, thw_cap)

    out_cap = _BLOCK_BUDGET_BYTES // 2                # 2x-buffered output block
    td_cap = max(8, out_cap // max(1, 2 * n * c_out * thw * itemsize))
    if max_td is not None:
        td_cap = min(td_cap, max_td)
    td = _largest_tile(d, 8, td_cap)

    # Depth innermost so the input block index (depends only on hi) is constant
    # across consecutive steps and the input is not re-DMA'd per depth chunk.
    grid = (hw // thw, d // td)
    # TODO(synk): also tile the batch/channel axes if N*C*THW alone exceeds the
    # VMEM budget (extremely large batches); not needed for typical conv shapes.

    kernel = functools.partial(
        _to3d_kernel, c_in=c, apply_decay=apply_decay, apply_ec=apply_ec,
        center=center, strength=strength)

    x2 = x.reshape(n, c, hw)  # lane-dense layout: fold (H, W) -> H*W

    in_bytes = n * c * hw * itemsize
    out_bytes = n * c_out * d * hw * itemsize
    cost = pl.CostEstimate(
        flops=(n * c * d * hw) if apply_decay else 0,
        transcendentals=(d * grid[0]) if apply_decay else 0,
        bytes_accessed=in_bytes + out_bytes,
    )

    out = pl.pallas_call(
        kernel,
        out_shape=jax.ShapeDtypeStruct((n, c_out, d, hw), x.dtype),
        grid=grid,
        in_specs=[pl.BlockSpec((n, c, thw), lambda hi, di: (0, 0, hi))],
        out_specs=pl.BlockSpec((n, c_out, td, thw), lambda hi, di: (0, 0, di, hi)),
        compiler_params=pltpu.CompilerParams(
            dimension_semantics=("parallel", "parallel"),
            vmem_limit_bytes=_VMEM_LIMIT_BYTES,
        ),
        cost_estimate=cost,
    )(x2)
    return out.reshape(n, c_out, d, h, w)


class To3DModPallas:
    """Pallas equivalent of To3DMod (no learned parameters)."""

    def __init__(self, expand_channels, decay, depth=None):
        self._ec = expand_channels
        self._decay = decay
        self._depth = depth

    def __call__(self, x):
        xs = x if isinstance(x, list) else [x]
        outs = []
        for i, xi in enumerate(xs):
            apply_decay = bool(self._decay[i]) if i < len(self._decay) else False
            apply_ec = bool(self._ec[i]) if i < len(self._ec) else False
            outs.append(_to3d_single(xi, apply_decay, apply_ec, self._depth))
        return outs if isinstance(x, list) else outs[0]


def _reference(x, apply_decay, apply_ec, depth=None):
    """Pure-JAX reference mirroring the torch forward."""
    n, c, h, w = x.shape
    d = int(depth) if depth is not None else min(h, w)
    out = jnp.broadcast_to(x[:, :, None, :, :], (n, c, d, h, w))
    if apply_decay:
        center = d // 2
        strength = 1.0 / float(center) * 5.0
        decays = jnp.array(
            [math.exp(-abs(center - j) * strength) for j in range(d)], x.dtype
        )
        out = out * decays[None, None, :, None, None]
    if apply_ec:
        out = jnp.concatenate([out, jnp.zeros((n, 1, d, h, w), x.dtype)], axis=1)
    return out


if __name__ == "__main__":
    key = jax.random.PRNGKey(0)
    x = jax.random.normal(key, (2, 4, 16, 16), dtype=jnp.float32)

    # decay + expand_channels, D = min(H, W) = 16
    mod = To3DModPallas(expand_channels=[True], decay=[True], depth=None)
    out = jax.block_until_ready(mod(x))
    ref = _reference(x, apply_decay=True, apply_ec=True, depth=None)
    assert out.shape == ref.shape == (2, 5, 16, 16, 16), out.shape
    assert jnp.allclose(out, ref, rtol=1e-5, atol=1e-6), "mismatch vs reference"

    # plain path (no decay / no channel expand), explicit depth
    mod2 = To3DModPallas(expand_channels=[False], decay=[False], depth=8)
    out2 = jax.block_until_ready(mod2(x))
    ref2 = _reference(x, apply_decay=False, apply_ec=False, depth=8)
    assert out2.shape == (2, 4, 8, 16, 16), out2.shape
    assert jnp.allclose(out2, ref2), "mismatch vs reference (plain path)"

    # multi-block grid path: force TD=8 (2 depth chunks) and THW=128 (2 hw tiles)
    out3 = jax.block_until_ready(
        _to3d_single(x, True, True, 16, max_td=8, max_thw=128))
    ref3 = _reference(x, apply_decay=True, apply_ec=True, depth=16)
    assert out3.shape == ref3.shape, out3.shape
    assert jnp.allclose(out3, ref3, rtol=1e-5, atol=1e-6), "mismatch (tiled path)"

    # non-multiple-of-8 depth (full-extent depth block)
    out4 = jax.block_until_ready(_to3d_single(x, True, False, 6))
    ref4 = _reference(x, apply_decay=True, apply_ec=False, depth=6)
    assert out4.shape == (2, 4, 6, 16, 16), out4.shape
    assert jnp.allclose(out4, ref4, rtol=1e-5, atol=1e-6), "mismatch (odd depth)"

    print("KERNEL_OK")
</pallas_src>

<mosaic_0001>
module attributes {stable_mosaic.version = 11 : i64} {
  func.func @_to3d_kernel(%arg0: i32, %arg1: i32, %arg2: memref<2x4x256xf32, #tpu.memory_space<vmem>>, %arg3: memref<2x5x16x256xf32, #tpu.memory_space<vmem>>) attributes {dimension_semantics = [#tpu.dimension_semantics<parallel>, #tpu.dimension_semantics<parallel>], iteration_bounds = array<i64: 1, 1>, scalar_prefetch = 0 : i64, scratch_operands = 0 : i64, tpu.core_type = #tpu.core_type<tc>, window_params = [{transform_indices = @transform_0, window_bounds = array<i64: 2, 4, 256>}, {transform_indices = @transform_1, window_bounds = array<i64: 2, 5, 16, 256>}]} {
    %c0 = arith.constant 0 : index
    %c0_0 = arith.constant 0 : index
    %c0_1 = arith.constant 0 : index
    %0 = vector.load %arg2[%c0, %c0_0, %c0_1] : memref<2x4x256xf32, #tpu.memory_space<vmem>>, vector<2x4x256xf32>
    %1 = vector.shape_cast %0 : vector<2x4x256xf32> to vector<2x4x1x256xf32>
    %2 = vector.shape_cast %1 : vector<2x4x1x256xf32> to vector<2x4x1x256xf32>
    %3 = vector.broadcast %2 : vector<2x4x1x256xf32> to vector<2x4x16x256xf32>
    %c16_i32 = arith.constant 16 : i32
    %4 = arith.muli %arg1, %c16_i32 : i32
    %5 = arith.sitofp %4 : i32 to f32
    %6 = tpu.iota {dimensions = array<i32: 2>} : vector<1x1x16x1xi32>
    %7 = arith.sitofp %6 : vector<1x1x16x1xi32> to vector<1x1x16x1xf32>
    %8 = vector.broadcast %5 : f32 to vector<1x1x16x1xf32>
    %9 = arith.addf %8, %7 : vector<1x1x16x1xf32>
    %cst = arith.constant 8.000000e+00 : f32
    %10 = vector.broadcast %cst : f32 to vector<1x1x16x1xf32>
    %11 = arith.subf %10, %9 : vector<1x1x16x1xf32>
    %12 = math.absf %11 : vector<1x1x16x1xf32>
    %cst_2 = arith.constant 0.000000e+00 : f32
    %13 = vector.broadcast %cst_2 : f32 to vector<1x1x16x1xf32>
    %14 = arith.subf %13, %12 : vector<1x1x16x1xf32>
    %cst_3 = arith.constant 6.250000e-01 : f32
    %15 = vector.broadcast %cst_3 : f32 to vector<1x1x16x1xf32>
    %16 = arith.mulf %14, %15 : vector<1x1x16x1xf32>
    %17 = math.exp %16 : vector<1x1x16x1xf32>
    %18 = vector.broadcast %17 : vector<1x1x16x1xf32> to vector<2x4x16x256xf32>
    %19 = arith.mulf %3, %18 : vector<2x4x16x256xf32>
    %c0_4 = arith.constant 0 : index
    %c0_5 = arith.constant 0 : index
    %c0_6 = arith.constant 0 : index
    %c0_7 = arith.constant 0 : index
    %20 = vector.load %arg3[%c0_4, %c0_5, %c0_6, %c0_7] : memref<2x5x16x256xf32, #tpu.memory_space<vmem>>, vector<2x4x16x256xf32>
    tpu.vector_store %arg3[%c0_4, %c0_5, %c0_6, %c0_7], %19 {strides = array<i32>} : memref<2x5x16x256xf32, #tpu.memory_space<vmem>>, vector<2x4x16x256xf32>,
    %cst_8 = arith.constant 0.000000e+00 : f32
    %21 = vector.broadcast %cst_8 : f32 to vector<2x1x16x256xf32>
    %c0_9 = arith.constant 0 : index
    %c4 = arith.constant 4 : index
    %c0_10 = arith.constant 0 : index
    %c0_11 = arith.constant 0 : index
    %22 = vector.load %arg3[%c0_9, %c4, %c0_10, %c0_11] : memref<2x5x16x256xf32, #tpu.memory_space<vmem>>, vector<2x1x16x256xf32>
    tpu.vector_store %arg3[%c0_9, %c4, %c0_10, %c0_11], %21 {strides = array<i32>} : memref<2x5x16x256xf32, #tpu.memory_space<vmem>>, vector<2x1x16x256xf32>,
    return
  }
  func.func @transform_0(%arg0: i32, %arg1: i32) -> (i32, i32, i32) {
    %c0_i32 = arith.constant 0 : i32
    %c0_i32_0 = arith.constant 0 : i32
    %c0_i32_1 = arith.constant 0 : i32
    return %c0_i32, %c0_i32_0, %arg0 : i32, i32, i32
  }
  func.func @transform_1(%arg0: i32, %arg1: i32) -> (i32, i32, i32, i32) {
    %c0_i32 = arith.constant 0 : i32
    %c0_i32_0 = arith.constant 0 : i32
    %c0_i32_1 = arith.constant 0 : i32
    return %c0_i32, %c0_i32_0, %arg1, %arg0 : i32, i32, i32, i32
  }
}

</mosaic_0001>

<llo_original>
// kernel: tpu_custom_call.1
$region0: #{tpu_custom_call.1}
  #allocation0 [shape = 'u32[]', space=smem, size = 0x4, offset = 0x4, fixed_abs, tag = 'smem constant byte address 0x4 - core index']
  #allocation1 [shape = 'u32[144,128]{1,0:T(1,128)}', space=vmem, size = 0x12000, scoped, tag = 'internal scratch']
  %s0 = inlined_call_operand.hbm [shape: f32[2,4,256], index: 0, kind: input, shape index: {}]
  %s1 = inlined_call_operand.hbm [shape: f32[2,5,16,256], index: 1, kind: output, shape index: {}]
  %s2 = sld [smem:[#allocation0]]
  $region18: #{tpu_custom_call.1} parent=0
    _
  %s4 = ssub.s32 1, %s2
  %s5 = scalar_select 0, %s4, %s2
  $region1: #{tpu_custom_call.1} parent=0
    #allocation2 [shape = 'u8[8192]{0}', space=vmem, size = 0x2000, scoped, tag = 'input window, operand 0, single buffered']
    #allocation3 [shape = 's32[1]{0}', space=sflag, size = 0x4, scoped, tag = 'scoped memory for tpu_custom_call.1']
    #allocation4 [shape = 's32[1]{0}', space=sflag, size = 0x4, scoped, tag = 'scoped memory for tpu_custom_call.1']
    #allocation5 [shape = 'u8[163840]{0}', space=vmem, size = 0x28000, scoped, tag = 'output window, operand 0, single buffered']
    %6 = vsyncpa [#allocation3], 0
    %7 = vsyncpa [#allocation4], 0
    // Predicated region
    $region2: #{tpu_custom_call.1} parent=1 // pred_check
      _
    $region3: #{tpu_custom_call.1} parent=1 // pred_check_branch
      %9 = sbr.rel (0) target = $region5
    $region4: #{tpu_custom_call.1} parent=1 // pred_region
      %s11 = ssub.s32 256, 256
      %12 = vsyncadd [#allocation3], %s11
      %s13 = sshll.u32 [#allocation2], 4
      %s14 = int_to_ptr.vmem [resolvable:$true] %s13
      %19 = dma.hbm_to_vmem [thread:$0]  %s0, 256, %s14, [#allocation3], 128, 128, 8
    $region5: #{tpu_custom_call.1} parent=1 // pred_fallthru
      _
    // Predicated region
    $region6: #{tpu_custom_call.1} parent=1 // pred_check
      _
    $region7: #{tpu_custom_call.1} parent=1 // pred_check_branch
      %21 = sbr.rel (0) target = $region9
    $region8: #{tpu_custom_call.1} parent=1 // pred_region
      %22 = dma.done [#allocation3], 256
    $region9: #{tpu_custom_call.1} parent=1 // pred_fallthru
      _
    %v23 = vld [vmem:[#allocation2] sm:$0xff]
    %v24 = vld [vmem:[#allocation2 + $0x8] sm:$0xff]
    %v28 = vunpack.c.l.s4 1966171168
    %v29 = vunpack.c.0.s8 %v28
    %v30 = vlaneseq
    %v31 = vshrl.u32 %v30, 7
    %v32 = vsub.s32 %v29, %v31
    %v33 = vrot.slane %v23, %v32
    %v34 = vcombine.high %v33, %v33
    %v36 = vunpack.c.l.s4 1966171168
    %v37 = vunpack.c.0.s8 %v36
    %v38 = vlaneseq
    %v39 = vshrl.u32 %v38, 7
    %v40 = vsub.s32 %v37, %v39
    %v41 = vrot.slane %v33, %v40
    %v43 = vunpack.c.l.s4 1966171168
    %v44 = vunpack.c.0.s8 %v43
    %v45 = vlaneseq
    %v46 = vshrl.u32 %v45, 7
    %v47 = vsub.s32 %v44, %v46
    %v48 = vrot.slane %v34, %v47
    %v49 = vcombine.high %v41, %v41
    %v50 = vcombine.high %v48, %v48
    %v52 = vunpack.c.l.s4 1966171168
    %v53 = vunpack.c.0.s8 %v52
    %v54 = vlaneseq
    %v55 = vshrl.u32 %v54, 7
    %v56 = vsub.s32 %v53, %v55
    %v57 = vrot.slane %v24, %v56
    %v58 = vcombine.high %v57, %v57
    %v60 = vunpack.c.l.s4 1966171168
    %v61 = vunpack.c.0.s8 %v60
    %v62 = vlaneseq
    %v63 = vshrl.u32 %v62, 7
    %v64 = vsub.s32 %v61, %v63
    %v65 = vrot.slane %v57, %v64
    %v67 = vunpack.c.l.s4 1966171168
    %v68 = vunpack.c.0.s8 %v67
    %v69 = vlaneseq
    %v70 = vshrl.u32 %v69, 7
    %v71 = vsub.s32 %v68, %v70
    %v72 = vrot.slane %v58, %v71
    %v73 = vcombine.high %v65, %v65
    %v74 = vcombine.high %v72, %v72
    %v75 = vlaneseq
    %v76 = vshrl.u32 %v75, 7
    %v77 = vsub.s32 0, %v76
    %v78 = vrot.slane %v41, %v77
    %v79 = vlaneseq
    %v80 = vshrl.u32 %v79, 7
    %v81 = vsub.s32 1, %v80
    %v82 = vrot.slane %v41, %v81
    %v83 = vlaneseq
    %v84 = vshrl.u32 %v83, 7
    %v85 = vsub.s32 0, %v84
    %v86 = vrot.slane %v48, %v85
    %v87 = vlaneseq
    %v88 = vshrl.u32 %v87, 7
    %v89 = vsub.s32 1, %v88
    %v90 = vrot.slane %v48, %v89
    %v91 = vlaneseq
    %v92 = vshrl.u32 %v91, 7
    %v93 = vsub.s32 0, %v92
    %v94 = vrot.slane %v49, %v93
    %v95 = vlaneseq
    %v96 = vshrl.u32 %v95, 7
    %v97 = vsub.s32 1, %v96
    %v98 = vrot.slane %v49, %v97
    %v99 = vlaneseq
    %v100 = vshrl.u32 %v99, 7
    %v101 = vsub.s32 0, %v100
    %v102 = vrot.slane %v50, %v101
    %v103 = vlaneseq
    %v104 = vshrl.u32 %v103, 7
    %v105 = vsub.s32 1, %v104
    %v106 = vrot.slane %v50, %v105
    %v107 = vlaneseq
    %v108 = vshrl.u32 %v107, 7
    %v109 = vsub.s32 0, %v108
    %v110 = vrot.slane %v65, %v109
    %v111 = vlaneseq
    %v112 = vshrl.u32 %v111, 7
    %v113 = vsub.s32 1, %v112
    %v114 = vrot.slane %v65, %v113
    %v115 = vlaneseq
    %v116 = vshrl.u32 %v115, 7
    %v117 = vsub.s32 0, %v116
    %v118 = vrot.slane %v72, %v117
    %v119 = vlaneseq
    %v120 = vshrl.u32 %v119, 7
    %v121 = vsub.s32 1, %v120
    %v122 = vrot.slane %v72, %v121
    %v123 = vlaneseq
    %v124 = vshrl.u32 %v123, 7
    %v125 = vsub.s32 0, %v124
    %v126 = vrot.slane %v73, %v125
    %v127 = vlaneseq
    %v128 = vshrl.u32 %v127, 7
    %v129 = vsub.s32 1, %v128
    %v130 = vrot.slane %v73, %v129
    %v131 = vlaneseq
    %v132 = vshrl.u32 %v131, 7
    %v133 = vsub.s32 0, %v132
    %v134 = vrot.slane %v74, %v133
    %v135 = vlaneseq
    %v136 = vshrl.u32 %v135, 7
    %v137 = vsub.s32 1, %v136
    %v138 = vrot.slane %v74, %v137
    %s155 = smul.u32 0, 16
    %s156 = scvt.s32.f32 %s155
    %v157 = vlaneseq
    %v158 = vshrl.u32 %v157, 7
    %v159 = vadd.s32 %v158, 8
    %v160 = vcvt.s32.f32 %v158
    %v161 = vcvt.s32.f32 %v159
    %v162 = vstv %s156
    %v163 = vadd.f32 %v162, %v160
    %v164 = vadd.f32 %v162, %v161
    %v165 = vsub.f32 8.0, %v163
    %v166 = vsub.f32 8.0, %v164
    %v167 = vand.u32 2147483647, %v165
    %v168 = vand.u32 2147483647, %v166
    %v169 = vsub.f32 0.0, %v167
    %v170 = vsub.f32 0.0, %v168
    %v171 = vmul.f32 %v169, 0.625
    %v172 = vmul.f32 %v170, 0.625
    %v173 = vmul.f32 %v171, 1.442695
    %v174 = vpow.pop %v173
    %v175 = vmul.f32 %v172, 1.442695
    %v176 = vpow.pop %v175
    %v177 = vmul.f32 %v78, %v174
    %v178 = vmul.f32 %v82, %v174
    %v179 = vmul.f32 %v78, %v176
    %v180 = vmul.f32 %v82, %v176
    %v181 = vmul.f32 %v86, %v174
    %v182 = vmul.f32 %v90, %v174
    %v183 = vmul.f32 %v86, %v176
    %v184 = vmul.f32 %v90, %v176
    %v185 = vmul.f32 %v94, %v174
    %v186 = vmul.f32 %v98, %v174
    %v187 = vmul.f32 %v94, %v176
    %v188 = vmul.f32 %v98, %v176
    %v189 = vmul.f32 %v102, %v174
    %v190 = vmul.f32 %v106, %v174
    %v191 = vmul.f32 %v102, %v176
    %v192 = vmul.f32 %v106, %v176
    %v193 = vmul.f32 %v110, %v174
    %v194 = vmul.f32 %v114, %v174
    %v195 = vmul.f32 %v110, %v176
    %v196 = vmul.f32 %v114, %v176
    %v197 = vmul.f32 %v118, %v174
    %v198 = vmul.f32 %v122, %v174
    %v199 = vmul.f32 %v118, %v176
    %v200 = vmul.f32 %v122, %v176
    %v201 = vmul.f32 %v126, %v174
    %v202 = vmul.f32 %v130, %v174
    %v203 = vmul.f32 %v126, %v176
    %v204 = vmul.f32 %v130, %v176
    %v205 = vmul.f32 %v134, %v174
    %v206 = vmul.f32 %v138, %v174
    %v207 = vmul.f32 %v134, %v176
    %v208 = vmul.f32 %v138, %v176
    %209 = vst [vmem:[#allocation5] sm:$0xff] %v177
    %210 = vst [vmem:[#allocation5 + $0x8] sm:$0xff] %v178
    %211 = vst [vmem:[#allocation5 + $0x10] sm:$0xff] %v179
    %212 = vst [vmem:[#allocation5 + $0x18] sm:$0xff] %v180
    %213 = vst [vmem:[#allocation5 + $0x20] sm:$0xff] %v181
    %214 = vst [vmem:[#allocation5 + $0x28] sm:$0xff] %v182
    %215 = vst [vmem:[#allocation5 + $0x30] sm:$0xff] %v183
    %216 = vst [vmem:[#allocation5 + $0x38] sm:$0xff] %v184
    %217 = vst [vmem:[#allocation5 + $0x40] sm:$0xff] %v185
    %218 = vst [vmem:[#allocation5 + $0x48] sm:$0xff] %v186
    %219 = vst [vmem:[#allocation5 + $0x50] sm:$0xff] %v187
    %220 = vst [vmem:[#allocation5 + $0x58] sm:$0xff] %v188
    %221 = vst [vmem:[#allocation5 + $0x60] sm:$0xff] %v189
    %222 = vst [vmem:[#allocation5 + $0x68] sm:$0xff] %v190
    %223 = vst [vmem:[#allocation5 + $0x70] sm:$0xff] %v191
    %224 = vst [vmem:[#allocation5 + $0x78] sm:$0xff] %v192
    %225 = vst [vmem:[#allocation5 + $0xa0] sm:$0xff] %v193
    %226 = vst [vmem:[#allocation5 + $0xa8] sm:$0xff] %v194
    %227 = vst [vmem:[#allocation5 + $0xb0] sm:$0xff] %v195
    %228 = vst [vmem:[#allocation5 + $0xb8] sm:$0xff] %v196
    %229 = vst [vmem:[#allocation5 + $0xc0] sm:$0xff] %v197
    %230 = vst [vmem:[#allocation5 + $0xc8] sm:$0xff] %v198
    %231 = vst [vmem:[#allocation5 + $0xd0] sm:$0xff] %v199
    %232 = vst [vmem:[#allocation5 + $0xd8] sm:$0xff] %v200
    %233 = vst [vmem:[#allocation5 + $0xe0] sm:$0xff] %v201
    %234 = vst [vmem:[#allocation5 + $0xe8] sm:$0xff] %v202
    %235 = vst [vmem:[#allocation5 + $0xf0] sm:$0xff] %v203
    %236 = vst [vmem:[#allocation5 + $0xf8] sm:$0xff] %v204
    %237 = vst [vmem:[#allocation5 + $0x100] sm:$0xff] %v205
    %238 = vst [vmem:[#allocation5 + $0x108] sm:$0xff] %v206
    %239 = vst [vmem:[#allocation5 + $0x110] sm:$0xff] %v207
    %240 = vst [vmem:[#allocation5 + $0x118] sm:$0xff] %v208
    %s241 = scalar_lea.vmem [#allocation5], 128
    %242 = vst [vmem:[%s241] sm:$0xff] 0.0
    %243 = vst [vmem:[%s241 + $0x8] sm:$0xff] 0.0
    %244 = vst [vmem:[%s241 + $0x10] sm:$0xff] 0.0
    %245 = vst [vmem:[%s241 + $0x18] sm:$0xff] 0.0
    %246 = vst [vmem:[%s241 + $0xa0] sm:$0xff] 0.0
    %247 = vst [vmem:[%s241 + $0xa8] sm:$0xff] 0.0
    %248 = vst [vmem:[%s241 + $0xb0] sm:$0xff] 0.0
    %249 = vst [vmem:[%s241 + $0xb8] sm:$0xff] 0.0
    // Predicated region
    $region10: #{tpu_custom_call.1} parent=1 // pred_check
      _
    $region11: #{tpu_custom_call.1} parent=1 // pred_check_branch
      %251 = sbr.rel (0) target = $region13
    $region12: #{tpu_custom_call.1} parent=1 // pred_region
      %s253 = ssub.s32 5120, 5120
      %254 = vsyncadd [#allocation4], %s253
      %s255 = sshll.u32 [#allocation5], 4
      %s256 = int_to_ptr.vmem [resolvable:$true] %s255
      %261 = dma.vmem_to_hbm [thread:$0]  %s256, 5120, %s1, [#allocation4], 256, 256, 16
    $region13: #{tpu_custom_call.1} parent=1 // pred_fallthru
      _
    // Predicated region
    $region14: #{tpu_custom_call.1} parent=1 // pred_check
      _
    $region15: #{tpu_custom_call.1} parent=1 // pred_check_branch
      %263 = sbr.rel (0) target = $region17
    $region16: #{tpu_custom_call.1} parent=1 // pred_region
      %264 = dma.done [#allocation4], 5120
    $region17: #{tpu_custom_call.1} parent=1 // pred_fallthru
      _
    %265 = vsyncpa [#allocation3], 1
    %266 = vsyncpa [#allocation4], 1

</llo_original>
